<compile_context>
chip_gen: v5e
topology: v5e:2x2
jax: 0.10.0
libtpu: 0.0.40
codegen_flags: <defaults>
</compile_context>

<pallas_src>
import functools

import jax
import jax.numpy as jnp
from jax import lax
from jax.experimental import pallas as pl
from jax.experimental.pallas import tpu as pltpu

# Fold the K taps into a single MXU contraction when the contraction width (K * Cin)
# is at most this; otherwise loop taps (large channels keep the MXU busy anyway and
# the im2col concat would materialize a large extra VMEM copy).
_IM2COL_MAX_FAN_IN = 256


def _layernorm_nct(x, gamma, beta, eps=1e-5):
    """LayerNorm over the channel axis (axis 0 in (C, T) layout), fused statistics.

    One pass computes sum(x) and sum(x*x); var = E[x^2] - mu^2 (clamped at 0).
    Matches nn.LayerNorm defaults (eps=1e-5) within f32 tolerance; safe post-ReLU.
    """
    n = x.shape[0]
    inv_n = 1.0 / n
    mu = jnp.sum(x, axis=0, keepdims=True) * inv_n           # (1, Tp)
    ex2 = jnp.sum(x * x, axis=0, keepdims=True) * inv_n      # (1, Tp)
    var = jnp.maximum(ex2 - mu * mu, 0.0)
    return (x - mu) * lax.rsqrt(var + eps) * gamma + beta    # gamma/beta: (C, 1)


def _conv1d_nct(z, w_ref, b_ref, k, use_im2col):
    """'same' 1-D conv over time (lanes), odd k, channels on sublanes.

    z:     (Cin, Tp) f32, already mask-multiplied; the time padding columns and the
           masked columns are EXACTLY zero and there are >= k//2 zero columns at the
           tail (enforced in the wrapper).  That makes the circular pltpu.roll shifts
           equivalent to PyTorch's zero 'same' padding with no per-tap edge masks:
           wrapped reads only hit zero columns, wrapped garbage only lands in padding
           columns that are re-zeroed by the next '* mask'.
    w_ref: im2col path: (Cout, k*Cin) bf16 (host-side concat of the per-tap matrices)
           per-tap path: (k, Cout, Cin) bf16
    b_ref: (Cout, 1) f32
    Returns (Cout, Tp) f32 (MXU accumulates in f32).
    """
    cin, Tp = z.shape
    pad = k // 2
    if use_im2col:
        # Roll in f32 (tile-aligned 8-row chunks for the concat), single bf16 cast.
        taps = [z if j == pad else pltpu.roll(z, shift=(pad - j) % Tp, axis=1)
                for j in range(k)]
        zcat = jnp.concatenate(taps, axis=0).astype(jnp.bfloat16)       # (k*Cin, Tp)
        acc = jnp.dot(w_ref[...], zcat, preferred_element_type=jnp.float32)
    else:
        cout = w_ref.shape[1]
        zb = z.astype(jnp.bfloat16)        # cast hoisted out of the tap loop
        acc = jnp.zeros((cout, Tp), jnp.float32)
        for j in range(k):                 # static unroll over taps
            zj = zb if j == pad else pltpu.roll(zb, shift=(pad - j) % Tp, axis=1)
            acc = acc + jnp.dot(w_ref[j], zj, preferred_element_type=jnp.float32)
    return acc + b_ref[...]


def _dp_kernel(x_ref, cond_ref, mask_ref,
               w1_ref, b1_ref, ga1_ref, be1_ref,
               w2_ref, b2_ref, ga2_ref, be2_ref,
               wp_ref, bp_ref,
               o_ref, *, kernel_size, im2col_1, im2col_2):
    x = x_ref[0]                   # (Cin, Tp) f32
    cond = cond_ref[0]             # (Cin, 1)  f32  (precomputed g @ Wc + bc)
    mask = mask_ref[0]             # (1, Tp)   f32

    filt = b1_ref.shape[0]
    Tp = x.shape[1]
    # Single hoisted broadcast for the (filt, Tp) mask-multiply sites
    # (JAX does not CSE broadcast_in_dim).
    mask_f = jnp.broadcast_to(mask, (filt, Tp))

    # Masked rows/columns are exactly zero here -> roll-based 'same' conv is valid.
    z = (x + cond) * mask

    # --- block 1 -------------------------------------------------------------
    h = _conv1d_nct(z, w1_ref, b1_ref, kernel_size, im2col_1)
    h = jnp.maximum(h, 0.0)
    h = _layernorm_nct(h, ga1_ref[...], be1_ref[...])
    # dropout -> identity at inference

    # --- block 2 -------------------------------------------------------------
    h = _conv1d_nct(h * mask_f, w2_ref, b2_ref, kernel_size, im2col_2)
    h = jnp.maximum(h, 0.0)
    h = _layernorm_nct(h, ga2_ref[...], be2_ref[...])

    # --- projection to 1 channel: VPU multiply + sublane reduce (keeps MXU free) --
    out = jnp.sum((h * mask_f) * wp_ref[...], axis=0, keepdims=True) + bp_ref[...]  # (1, Tp)
    o_ref[0] = (out * mask).astype(o_ref.dtype)      # lane-dense store


def duration_predictor(x_nct, x_mask_n1t, g_ng, params, kernel_size,
                       force_per_tap=False):
    """x_nct: (B, Cin, T), x_mask_n1t: (B, 1, T), g_ng: (B, Gin) -> (B, 1, T)."""
    B, cin, T = x_nct.shape
    K = kernel_size
    if K % 2 != 1:
        raise ValueError("only odd kernel_size supported (PyTorch padding=k//2 'same')")
    pad = K // 2
    filt = params["w1"].shape[1]           # w1: (K, filt, cin)

    # Time padding: at least K//2 zero (masked) columns so the circular roll wrap
    # stays inside padding, rounded up to a 128-lane multiple for dense vregs/vsts.
    Tp = ((T + pad + 127) // 128) * 128
    pad_t = Tp - T
    # Coupling the edge-mask-free conv relies on; do not weaken without re-adding masks.
    assert pad_t >= pad, (pad_t, pad)

    x = x_nct.astype(jnp.float32)                       # already NCT — no transpose
    mask = x_mask_n1t.astype(jnp.float32)               # (B, 1, T), lane-dense
    if pad_t:
        x = jnp.pad(x, ((0, 0), (0, 0), (0, pad_t)))
        mask = jnp.pad(mask, ((0, 0), (0, 0), (0, pad_t)))

    # cond 1x1 conv hoisted out of the kernel: one (B,Gin)x(Gin,Cin) matmul in XLA.
    cond = (g_ng.astype(jnp.float32) @ params["wc"] + params["bc"])[:, :, None]  # (B, cin, 1)

    # Conv weight layout per path (decided statically from channel sizes).
    im2col_1 = (not force_per_tap) and (cin * K <= _IM2COL_MAX_FAN_IN)
    im2col_2 = (not force_per_tap) and (filt * K <= _IM2COL_MAX_FAN_IN)
    w1 = params["w1"].astype(jnp.bfloat16)              # (K, filt, cin)
    w2 = params["w2"].astype(jnp.bfloat16)              # (K, filt, filt)
    if im2col_1:
        w1_k = jnp.concatenate([w1[j] for j in range(K)], axis=1)      # (filt, K*cin)
        w1_spec = pl.BlockSpec((filt, K * cin), lambda b: (0, 0))
    else:
        w1_k = w1
        w1_spec = pl.BlockSpec((K, filt, cin), lambda b: (0, 0, 0))
    if im2col_2:
        w2_k = jnp.concatenate([w2[j] for j in range(K)], axis=1)      # (filt, K*filt)
        w2_spec = pl.BlockSpec((filt, K * filt), lambda b: (0, 0))
    else:
        w2_k = w2
        w2_spec = pl.BlockSpec((K, filt, filt), lambda b: (0, 0, 0))

    # Advisory cost estimate for XLA's scheduler.
    flops = int(2 * B * Tp * K * (cin * filt + filt * filt) + 12 * B * Tp * filt)
    bytes_accessed = int(4 * (x.size + mask.size + cond.size + B * Tp)
                         + 2 * (w1_k.size + w2_k.size) + 4 * (6 * filt + 2))
    cost = pl.CostEstimate(flops=flops, transcendentals=int(2 * B * Tp),
                           bytes_accessed=bytes_accessed)

    # Generation-aware scoped-VMEM handling: assume the smallest default (v5e: 16 MiB)
    # when deciding whether to raise the limit (raising it on v6e/v7x is harmless),
    # and cap below the chip's physical VMEM (queried; 128 MiB fallback).
    weight_bytes = int(2 * (w1_k.size + w2_k.size) + 4 * (6 * filt + 2))
    block_bytes = int(4 * Tp * (cin + 2) + 4 * cin)           # x / mask / out blocks + cond
    live_bytes = int(4 * Tp * (2 * cin + 6 * filt) + 2 * Tp * K * max(cin, filt))
    vmem_need = 2 * block_bytes + 2 * weight_bytes + live_bytes
    phys_vmem = 128 * 1024 * 1024
    try:
        if hasattr(pltpu, "get_tpu_info"):
            phys_vmem = int(getattr(pltpu.get_tpu_info(), "vmem_capacity_bytes", phys_vmem))
    except Exception:
        pass
    vmem_limit = None
    if vmem_need > 16 * 1024 * 1024:
        vmem_limit = int(min(vmem_need * 5 // 4, (phys_vmem * 7) // 8))

    out = pl.pallas_call(
        functools.partial(_dp_kernel, kernel_size=K,
                          im2col_1=im2col_1, im2col_2=im2col_2),
        out_shape=jax.ShapeDtypeStruct((B, 1, Tp), jnp.float32),
        grid=(B,),
        in_specs=[
            pl.BlockSpec((1, cin, Tp), lambda b: (b, 0, 0)),      # x (NCT)
            pl.BlockSpec((1, cin, 1), lambda b: (b, 0, 0)),       # cond(g)
            pl.BlockSpec((1, 1, Tp), lambda b: (b, 0, 0)),        # mask (lane-dense)
            w1_spec,                                              # conv1 weight (bf16)
            pl.BlockSpec((filt, 1), lambda b: (0, 0)),            # conv1 bias
            pl.BlockSpec((filt, 1), lambda b: (0, 0)),            # ln1 gamma
            pl.BlockSpec((filt, 1), lambda b: (0, 0)),            # ln1 beta
            w2_spec,                                              # conv2 weight (bf16)
            pl.BlockSpec((filt, 1), lambda b: (0, 0)),            # conv2 bias
            pl.BlockSpec((filt, 1), lambda b: (0, 0)),            # ln2 gamma
            pl.BlockSpec((filt, 1), lambda b: (0, 0)),            # ln2 beta
            pl.BlockSpec((filt, 1), lambda b: (0, 0)),            # proj weight (column)
            pl.BlockSpec((1, 1), lambda b: (0, 0)),               # proj bias
        ],
        out_specs=pl.BlockSpec((1, 1, Tp), lambda b: (b, 0, 0)),
        compiler_params=pltpu.CompilerParams(
            dimension_semantics=("parallel",),
            vmem_limit_bytes=vmem_limit),
        cost_estimate=cost,
    )(x, cond, mask,
      w1_k, params["b1"], params["ga1"], params["be1"],
      w2_k, params["b2"], params["ga2"], params["be2"],
      params["wp"], params["bp"])

    # Drop time padding; output already (B, 1, T)-shaped — no reshape/transpose needed.
    return out[:, :, :T]


# ------------------------- pure-JAX reference (same numerics) -------------------------

def _conv1d_same_ref(z, w, b, k):
    """z: (B, C, T) masked f32; w: (k, Cout, Cin) f32; b: (Cout, 1) f32."""
    pad = k // 2
    T = z.shape[-1]
    zp = jnp.pad(z, ((0, 0), (0, 0), (pad, pad)))
    acc = jnp.zeros((z.shape[0], w.shape[1], T), jnp.float32)
    for j in range(k):
        acc = acc + jnp.einsum("oc,bct->bot",
                               w[j].astype(jnp.bfloat16),
                               zp[:, :, j:j + T].astype(jnp.bfloat16),
                               preferred_element_type=jnp.float32)
    return acc + b


def _layernorm_ref(x, gamma, beta, eps=1e-5):
    mu = jnp.mean(x, axis=1, keepdims=True)
    var = jnp.mean((x - mu) ** 2, axis=1, keepdims=True)
    return (x - mu) * lax.rsqrt(var + eps) * gamma + beta


def duration_predictor_reference(x_nct, x_mask_n1t, g_ng, params, kernel_size):
    x = x_nct.astype(jnp.float32)
    mask = x_mask_n1t.astype(jnp.float32)
    cond = (g_ng.astype(jnp.float32) @ params["wc"] + params["bc"])[:, :, None]
    z = (x + cond) * mask
    h = _conv1d_same_ref(z, params["w1"], params["b1"], kernel_size)
    h = jnp.maximum(h, 0.0)
    h = _layernorm_ref(h, params["ga1"], params["be1"])
    h = _conv1d_same_ref(h * mask, params["w2"], params["b2"], kernel_size)
    h = jnp.maximum(h, 0.0)
    h = _layernorm_ref(h, params["ga2"], params["be2"])
    out = jnp.sum((h * mask) * params["wp"][None], axis=1, keepdims=True) + params["bp"]
    return out * mask


def init_params(key, in_channels, filter_channels, kernel_size, gin_channels):
    ks = jax.random.split(key, 8)
    scale = 0.1
    f32 = jnp.float32
    return {
        # cond 1x1 conv (applied in the wrapper in f32)
        "wc": scale * jax.random.normal(ks[0], (gin_channels, in_channels), f32),
        "bc": scale * jax.random.normal(ks[1], (1, in_channels), f32),
        # conv weights in (k, Cout, Cin) layout; bf16 MXU operands, f32 accumulation
        "w1": scale * jax.random.normal(
            ks[2], (kernel_size, filter_channels, in_channels), f32),
        "b1": scale * jax.random.normal(ks[3], (filter_channels, 1), f32),
        "ga1": jnp.ones((filter_channels, 1), f32),
        "be1": jnp.zeros((filter_channels, 1), f32),
        "w2": scale * jax.random.normal(
            ks[4], (kernel_size, filter_channels, filter_channels), f32),
        "b2": scale * jax.random.normal(ks[5], (filter_channels, 1), f32),
        "ga2": jnp.ones((filter_channels, 1), f32),
        "be2": jnp.zeros((filter_channels, 1), f32),
        # proj 1x1 conv -> 1 channel, applied as a sublane-reduce in the kernel (f32)
        "wp": scale * jax.random.normal(ks[6], (filter_channels, 1), f32),
        "bp": scale * jax.random.normal(ks[7], (1, 1), f32),
    }


if __name__ == "__main__":
    B, T = 2, 16
    in_channels, filter_channels, kernel_size, gin_channels = 8, 16, 3, 4
    p_dropout = 0.5  # dropout is identity at inference; kept for signature parity

    key = jax.random.PRNGKey(0)
    kx, kg, kp = jax.random.split(key, 3)

    x = jax.random.normal(kx, (B, in_channels, T), jnp.float32)          # (B, C, T)
    lengths = jnp.array([12, 16], jnp.int32)
    x_mask = (jnp.arange(T)[None, :] < lengths[:, None]).astype(jnp.float32)[:, None, :]
    g = jax.random.normal(kg, (B, gin_channels), jnp.float32)            # (B, Gin)

    params = init_params(kp, in_channels, filter_channels, kernel_size, gin_channels)

    ref = duration_predictor_reference(x, x_mask, g, params, kernel_size)

    # im2col path (small fan-in)
    out = duration_predictor(x, x_mask, g, params, kernel_size)
    out = jax.block_until_ready(out)
    assert out.shape == (B, 1, T), out.shape
    err = float(jnp.max(jnp.abs(out - ref)))
    assert jnp.allclose(out, ref, atol=1e-2, rtol=1e-2), f"im2col max abs err {err}"

    # per-tap path (exercised too, so both code paths are validated on hardware)
    out2 = duration_predictor(x, x_mask, g, params, kernel_size, force_per_tap=True)
    out2 = jax.block_until_ready(out2)
    err2 = float(jnp.max(jnp.abs(out2 - ref)))
    assert jnp.allclose(out2, ref, atol=1e-2, rtol=1e-2), f"per-tap max abs err {err2}"

    print("KERNEL_OK")
</pallas_src>

<mosaic_0001>
module attributes {stable_mosaic.version = 11 : i64} {
  func.func @_dp_kernel(%arg0: i32, %arg1: memref<1x8x128xf32, #tpu.memory_space<vmem>>, %arg2: memref<1x8x1xf32, #tpu.memory_space<vmem>>, %arg3: memref<1x1x128xf32, #tpu.memory_space<vmem>>, %arg4: memref<16x24xbf16, #tpu.memory_space<vmem>>, %arg5: memref<16x1xf32, #tpu.memory_space<vmem>>, %arg6: memref<16x1xf32, #tpu.memory_space<vmem>>, %arg7: memref<16x1xf32, #tpu.memory_space<vmem>>, %arg8: memref<16x48xbf16, #tpu.memory_space<vmem>>, %arg9: memref<16x1xf32, #tpu.memory_space<vmem>>, %arg10: memref<16x1xf32, #tpu.memory_space<vmem>>, %arg11: memref<16x1xf32, #tpu.memory_space<vmem>>, %arg12: memref<16x1xf32, #tpu.memory_space<vmem>>, %arg13: memref<1x1xf32, #tpu.memory_space<vmem>>, %arg14: memref<1x1x128xf32, #tpu.memory_space<vmem>>) attributes {dimension_semantics = [#tpu.dimension_semantics<parallel>], iteration_bounds = array<i64: 2>, scalar_prefetch = 0 : i64, scratch_operands = 0 : i64, tpu.core_type = #tpu.core_type<tc>, window_params = [{transform_indices = @transform_0, window_bounds = array<i64: 1, 8, 128>}, {transform_indices = @transform_1, window_bounds = array<i64: 1, 8, 1>}, {transform_indices = @transform_2, window_bounds = array<i64: 1, 1, 128>}, {pipeline_mode = #tpu.pipeline_mode<synchronous>, transform_indices = @transform_3, window_bounds = array<i64: 16, 24>}, {pipeline_mode = #tpu.pipeline_mode<synchronous>, transform_indices = @transform_4, window_bounds = array<i64: 16, 1>}, {pipeline_mode = #tpu.pipeline_mode<synchronous>, transform_indices = @transform_5, window_bounds = array<i64: 16, 1>}, {pipeline_mode = #tpu.pipeline_mode<synchronous>, transform_indices = @transform_6, window_bounds = array<i64: 16, 1>}, {pipeline_mode = #tpu.pipeline_mode<synchronous>, transform_indices = @transform_7, window_bounds = array<i64: 16, 48>}, {pipeline_mode = #tpu.pipeline_mode<synchronous>, transform_indices = @transform_8, window_bounds = array<i64: 16, 1>}, {pipeline_mode = #tpu.pipeline_mode<synchronous>, transform_indices = @transform_9, window_bounds = array<i64: 16, 1>}, {pipeline_mode = #tpu.pipeline_mode<synchronous>, transform_indices = @transform_10, window_bounds = array<i64: 16, 1>}, {pipeline_mode = #tpu.pipeline_mode<synchronous>, transform_indices = @transform_11, window_bounds = array<i64: 16, 1>}, {pipeline_mode = #tpu.pipeline_mode<synchronous>, transform_indices = @transform_12, window_bounds = array<i64: 1, 1>}, {transform_indices = @transform_13, window_bounds = array<i64: 1, 1, 128>}]} {
    %c0 = arith.constant 0 : index
    %c0_0 = arith.constant 0 : index
    %c0_1 = arith.constant 0 : index
    %0 = vector.load %arg1[%c0, %c0_0, %c0_1] : memref<1x8x128xf32, #tpu.memory_space<vmem>>, vector<1x8x128xf32>
    %1 = vector.shape_cast %0 : vector<1x8x128xf32> to vector<8x128xf32>
    %c0_2 = arith.constant 0 : index
    %c0_3 = arith.constant 0 : index
    %c0_4 = arith.constant 0 : index
    %2 = vector.load %arg2[%c0_2, %c0_3, %c0_4] : memref<1x8x1xf32, #tpu.memory_space<vmem>>, vector<1x8x1xf32>
    %3 = vector.shape_cast %2 : vector<1x8x1xf32> to vector<8x1xf32>
    %c0_5 = arith.constant 0 : index
    %c0_6 = arith.constant 0 : index
    %c0_7 = arith.constant 0 : index
    %4 = vector.load %arg3[%c0_5, %c0_6, %c0_7] : memref<1x1x128xf32, #tpu.memory_space<vmem>>, vector<1x1x128xf32>
    %5 = vector.shape_cast %4 : vector<1x1x128xf32> to vector<1x128xf32>
    %6 = vector.shape_cast %5 : vector<1x128xf32> to vector<1x128xf32>
    %7 = vector.broadcast %6 : vector<1x128xf32> to vector<16x128xf32>
    %8 = vector.broadcast %3 : vector<8x1xf32> to vector<8x128xf32>
    %9 = arith.addf %1, %8 : vector<8x128xf32>
    %10 = vector.broadcast %5 : vector<1x128xf32> to vector<8x128xf32>
    %11 = arith.mulf %9, %10 : vector<8x128xf32>
    %c1_i32 = arith.constant 1 : i32
    %12 = tpu.dynamic_rotate %11 by %c1_i32 dim 1 : vector<8x128xf32>, i32 -> vector<8x128xf32>
    %c127_i32 = arith.constant 127 : i32
    %13 = tpu.dynamic_rotate %11 by %c127_i32 dim 1 : vector<8x128xf32>, i32 -> vector<8x128xf32>
    %14 = tpu.concatenate %12, %11, %13 in 0 : vector<8x128xf32>, vector<8x128xf32>, vector<8x128xf32> -> vector<24x128xf32>
    %15 = arith.truncf %14 : vector<24x128xf32> to vector<24x128xbf16>
    %c0_8 = arith.constant 0 : index
    %c0_9 = arith.constant 0 : index
    %16 = vector.load %arg4[%c0_8, %c0_9] : memref<16x24xbf16, #tpu.memory_space<vmem>>, vector<16x24xbf16>
    %cst = arith.constant dense<0.000000e+00> : vector<16x128xf32>
    %17 = tpu.matmul %16, %15, %cst {dimension_numbers = #tpu.dot_dimension_numbers<[1], [0], [0], [1], [0, 0, 1, 1], [], []>} : vector<16x24xbf16>, vector<24x128xbf16>, vector<16x128xf32> -> vector<16x128xf32>
    %c0_10 = arith.constant 0 : index
    %c0_11 = arith.constant 0 : index
    %18 = vector.load %arg5[%c0_10, %c0_11] : memref<16x1xf32, #tpu.memory_space<vmem>>, vector<16x1xf32>
    %19 = vector.broadcast %18 : vector<16x1xf32> to vector<16x128xf32>
    %20 = arith.addf %17, %19 : vector<16x128xf32>
    %cst_12 = arith.constant 0.000000e+00 : f32
    %21 = vector.broadcast %cst_12 : f32 to vector<16x128xf32>
    %22 = arith.maximumf %20, %21 : vector<16x128xf32>
    %c0_13 = arith.constant 0 : index
    %c0_14 = arith.constant 0 : index
    %23 = vector.load %arg6[%c0_13, %c0_14] : memref<16x1xf32, #tpu.memory_space<vmem>>, vector<16x1xf32>
    %c0_15 = arith.constant 0 : index
    %c0_16 = arith.constant 0 : index
    %24 = vector.load %arg7[%c0_15, %c0_16] : memref<16x1xf32, #tpu.memory_space<vmem>>, vector<16x1xf32>
    %cst_17 = arith.constant dense<0.000000e+00> : vector<128xf32>
    %25 = vector.multi_reduction <add>, %22, %cst_17 [0] : vector<16x128xf32> to vector<128xf32>
    %26 = vector.shape_cast %25 : vector<128xf32> to vector<1x128xf32>
    %cst_18 = arith.constant 6.250000e-02 : f32
    %27 = vector.broadcast %cst_18 : f32 to vector<1x128xf32>
    %28 = arith.mulf %26, %27 : vector<1x128xf32>
    %29 = arith.mulf %22, %22 : vector<16x128xf32>
    %cst_19 = arith.constant dense<0.000000e+00> : vector<128xf32>
    %30 = vector.multi_reduction <add>, %29, %cst_19 [0] : vector<16x128xf32> to vector<128xf32>
    %31 = vector.shape_cast %30 : vector<128xf32> to vector<1x128xf32>
    %cst_20 = arith.constant 6.250000e-02 : f32
    %32 = vector.broadcast %cst_20 : f32 to vector<1x128xf32>
    %33 = arith.mulf %31, %32 : vector<1x128xf32>
    %34 = arith.mulf %28, %28 : vector<1x128xf32>
    %35 = arith.subf %33, %34 : vector<1x128xf32>
    %cst_21 = arith.constant 0.000000e+00 : f32
    %36 = vector.broadcast %cst_21 : f32 to vector<1x128xf32>
    %37 = arith.maximumf %35, %36 : vector<1x128xf32>
    %38 = vector.broadcast %28 : vector<1x128xf32> to vector<16x128xf32>
    %39 = arith.subf %22, %38 : vector<16x128xf32>
    %cst_22 = arith.constant 9.99999974E-6 : f32
    %40 = vector.broadcast %cst_22 : f32 to vector<1x128xf32>
    %41 = arith.addf %37, %40 : vector<1x128xf32>
    %42 = math.rsqrt %41 : vector<1x128xf32>
    %43 = vector.broadcast %42 : vector<1x128xf32> to vector<16x128xf32>
    %44 = arith.mulf %39, %43 : vector<16x128xf32>
    %45 = vector.broadcast %23 : vector<16x1xf32> to vector<16x128xf32>
    %46 = arith.mulf %44, %45 : vector<16x128xf32>
    %47 = vector.broadcast %24 : vector<16x1xf32> to vector<16x128xf32>
    %48 = arith.addf %46, %47 : vector<16x128xf32>
    %49 = arith.mulf %48, %7 : vector<16x128xf32>
    %c1_i32_23 = arith.constant 1 : i32
    %50 = tpu.dynamic_rotate %49 by %c1_i32_23 dim 1 : vector<16x128xf32>, i32 -> vector<16x128xf32>
    %c127_i32_24 = arith.constant 127 : i32
    %51 = tpu.dynamic_rotate %49 by %c127_i32_24 dim 1 : vector<16x128xf32>, i32 -> vector<16x128xf32>
    %52 = tpu.concatenate %50, %49, %51 in 0 : vector<16x128xf32>, vector<16x128xf32>, vector<16x128xf32> -> vector<48x128xf32>
    %53 = arith.truncf %52 : vector<48x128xf32> to vector<48x128xbf16>
    %c0_25 = arith.constant 0 : index
    %c0_26 = arith.constant 0 : index
    %54 = vector.load %arg8[%c0_25, %c0_26] : memref<16x48xbf16, #tpu.memory_space<vmem>>, vector<16x48xbf16>
    %cst_27 = arith.constant dense<0.000000e+00> : vector<16x128xf32>
    %55 = tpu.matmul %54, %53, %cst_27 {dimension_numbers = #tpu.dot_dimension_numbers<[1], [0], [0], [1], [0, 0, 1, 1], [], []>} : vector<16x48xbf16>, vector<48x128xbf16>, vector<16x128xf32> -> vector<16x128xf32>
    %c0_28 = arith.constant 0 : index
    %c0_29 = arith.constant 0 : index
    %56 = vector.load %arg9[%c0_28, %c0_29] : memref<16x1xf32, #tpu.memory_space<vmem>>, vector<16x1xf32>
    %57 = vector.broadcast %56 : vector<16x1xf32> to vector<16x128xf32>
    %58 = arith.addf %55, %57 : vector<16x128xf32>
    %cst_30 = arith.constant 0.000000e+00 : f32
    %59 = vector.broadcast %cst_30 : f32 to vector<16x128xf32>
    %60 = arith.maximumf %58, %59 : vector<16x128xf32>
    %c0_31 = arith.constant 0 : index
    %c0_32 = arith.constant 0 : index
    %61 = vector.load %arg10[%c0_31, %c0_32] : memref<16x1xf32, #tpu.memory_space<vmem>>, vector<16x1xf32>
    %c0_33 = arith.constant 0 : index
    %c0_34 = arith.constant 0 : index
    %62 = vector.load %arg11[%c0_33, %c0_34] : memref<16x1xf32, #tpu.memory_space<vmem>>, vector<16x1xf32>
    %cst_35 = arith.constant dense<0.000000e+00> : vector<128xf32>
    %63 = vector.multi_reduction <add>, %60, %cst_35 [0] : vector<16x128xf32> to vector<128xf32>
    %64 = vector.shape_cast %63 : vector<128xf32> to vector<1x128xf32>
    %cst_36 = arith.constant 6.250000e-02 : f32
    %65 = vector.broadcast %cst_36 : f32 to vector<1x128xf32>
    %66 = arith.mulf %64, %65 : vector<1x128xf32>
    %67 = arith.mulf %60, %60 : vector<16x128xf32>
    %cst_37 = arith.constant dense<0.000000e+00> : vector<128xf32>
    %68 = vector.multi_reduction <add>, %67, %cst_37 [0] : vector<16x128xf32> to vector<128xf32>
    %69 = vector.shape_cast %68 : vector<128xf32> to vector<1x128xf32>
    %cst_38 = arith.constant 6.250000e-02 : f32
    %70 = vector.broadcast %cst_38 : f32 to vector<1x128xf32>
    %71 = arith.mulf %69, %70 : vector<1x128xf32>
    %72 = arith.mulf %66, %66 : vector<1x128xf32>
    %73 = arith.subf %71, %72 : vector<1x128xf32>
    %cst_39 = arith.constant 0.000000e+00 : f32
    %74 = vector.broadcast %cst_39 : f32 to vector<1x128xf32>
    %75 = arith.maximumf %73, %74 : vector<1x128xf32>
    %76 = vector.broadcast %66 : vector<1x128xf32> to vector<16x128xf32>
    %77 = arith.subf %60, %76 : vector<16x128xf32>
    %cst_40 = arith.constant 9.99999974E-6 : f32
    %78 = vector.broadcast %cst_40 : f32 to vector<1x128xf32>
    %79 = arith.addf %75, %78 : vector<1x128xf32>
    %80 = math.rsqrt %79 : vector<1x128xf32>
    %81 = vector.broadcast %80 : vector<1x128xf32> to vector<16x128xf32>
    %82 = arith.mulf %77, %81 : vector<16x128xf32>
    %83 = vector.broadcast %61 : vector<16x1xf32> to vector<16x128xf32>
    %84 = arith.mulf %82, %83 : vector<16x128xf32>
    %85 = vector.broadcast %62 : vector<16x1xf32> to vector<16x128xf32>
    %86 = arith.addf %84, %85 : vector<16x128xf32>
    %87 = arith.mulf %86, %7 : vector<16x128xf32>
    %c0_41 = arith.constant 0 : index
    %c0_42 = arith.constant 0 : index
    %88 = vector.load %arg12[%c0_41, %c0_42] : memref<16x1xf32, #tpu.memory_space<vmem>>, vector<16x1xf32>
    %89 = vector.broadcast %88 : vector<16x1xf32> to vector<16x128xf32>
    %90 = arith.mulf %87, %89 : vector<16x128xf32>
    %cst_43 = arith.constant dense<0.000000e+00> : vector<128xf32>
    %91 = vector.multi_reduction <add>, %90, %cst_43 [0] : vector<16x128xf32> to vector<128xf32>
    %92 = vector.shape_cast %91 : vector<128xf32> to vector<1x128xf32>
    %c0_44 = arith.constant 0 : index
    %c0_45 = arith.constant 0 : index
    %93 = vector.load %arg13[%c0_44, %c0_45] : memref<1x1xf32, #tpu.memory_space<vmem>>, vector<1x1xf32>
    %94 = vector.broadcast %93 : vector<1x1xf32> to vector<1x128xf32>
    %95 = arith.addf %92, %94 : vector<1x128xf32>
    %96 = arith.mulf %95, %5 : vector<1x128xf32>
    %c0_46 = arith.constant 0 : index
    %c0_47 = arith.constant 0 : index
    %c0_48 = arith.constant 0 : index
    %97 = vector.load %arg14[%c0_46, %c0_47, %c0_48] : memref<1x1x128xf32, #tpu.memory_space<vmem>>, vector<1x1x128xf32>
    %98 = vector.shape_cast %97 : vector<1x1x128xf32> to vector<1x128xf32>
    %99 = vector.shape_cast %96 : vector<1x128xf32> to vector<1x1x128xf32>
    tpu.vector_store %arg14[%c0_46, %c0_47, %c0_48], %99 {strides = array<i32>} : memref<1x1x128xf32, #tpu.memory_space<vmem>>, vector<1x1x128xf32>,
    return
  }
  func.func @transform_0(%arg0: i32) -> (i32, i32, i32) {
    %c0_i32 = arith.constant 0 : i32
    %c0_i32_0 = arith.constant 0 : i32
    %c0_i32_1 = arith.constant 0 : i32
    return %arg0, %c0_i32, %c0_i32_0 : i32, i32, i32
  }
  func.func @transform_1(%arg0: i32) -> (i32, i32, i32) {
    %c0_i32 = arith.constant 0 : i32
    %c0_i32_0 = arith.constant 0 : i32
    %c0_i32_1 = arith.constant 0 : i32
    return %arg0, %c0_i32, %c0_i32_0 : i32, i32, i32
  }
  func.func @transform_2(%arg0: i32) -> (i32, i32, i32) {
    %c0_i32 = arith.constant 0 : i32
    %c0_i32_0 = arith.constant 0 : i32
    %c0_i32_1 = arith.constant 0 : i32
    return %arg0, %c0_i32, %c0_i32_0 : i32, i32, i32
  }
  func.func @transform_3(%arg0: i32) -> (i32, i32) {
    %c0_i32 = arith.constant 0 : i32
    %c0_i32_0 = arith.constant 0 : i32
    %c0_i32_1 = arith.constant 0 : i32
    return %c0_i32, %c0_i32_0 : i32, i32
  }
  func.func @transform_4(%arg0: i32) -> (i32, i32) {
    %c0_i32 = arith.constant 0 : i32
    %c0_i32_0 = arith.constant 0 : i32
    %c0_i32_1 = arith.constant 0 : i32
    return %c0_i32, %c0_i32_0 : i32, i32
  }
  func.func @transform_5(%arg0: i32) -> (i32, i32) {
    %c0_i32 = arith.constant 0 : i32
    %c0_i32_0 = arith.constant 0 : i32
    %c0_i32_1 = arith.constant 0 : i32
    return %c0_i32, %c0_i32_0 : i32, i32
  }
  func.func @transform_6(%arg0: i32) -> (i32, i32) {
    %c0_i32 = arith.constant 0 : i32
    %c0_i32_0 = arith.constant 0 : i32
    %c0_i32_1 = arith.constant 0 : i32
    return %c0_i32, %c0_i32_0 : i32, i32
  }
  func.func @transform_7(%arg0: i32) -> (i32, i32) {
    %c0_i32 = arith.constant 0 : i32
    %c0_i32_0 = arith.constant 0 : i32
    %c0_i32_1 = arith.constant 0 : i32
    return %c0_i32, %c0_i32_0 : i32, i32
  }
  func.func @transform_8(%arg0: i32) -> (i32, i32) {
    %c0_i32 = arith.constant 0 : i32
    %c0_i32_0 = arith.constant 0 : i32
    %c0_i32_1 = arith.constant 0 : i32
    return %c0_i32, %c0_i32_0 : i32, i32
  }
  func.func @transform_9(%arg0: i32) -> (i32, i32) {
    %c0_i32 = arith.constant 0 : i32
    %c0_i32_0 = arith.constant 0 : i32
    %c0_i32_1 = arith.constant 0 : i32
    return %c0_i32, %c0_i32_0 : i32, i32
  }
  func.func @transform_10(%arg0: i32) -> (i32, i32) {
    %c0_i32 = arith.constant 0 : i32
    %c0_i32_0 = arith.constant 0 : i32
    %c0_i32_1 = arith.constant 0 : i32
    return %c0_i32, %c0_i32_0 : i32, i32
  }
  func.func @transform_11(%arg0: i32) -> (i32, i32) {
    %c0_i32 = arith.constant 0 : i32
    %c0_i32_0 = arith.constant 0 : i32
    %c0_i32_1 = arith.constant 0 : i32
    return %c0_i32, %c0_i32_0 : i32, i32
  }
  func.func @transform_12(%arg0: i32) -> (i32, i32) {
    %c0_i32 = arith.constant 0 : i32
    %c0_i32_0 = arith.constant 0 : i32
    %c0_i32_1 = arith.constant 0 : i32
    return %c0_i32, %c0_i32_0 : i32, i32
  }
  func.func @transform_13(%arg0: i32) -> (i32, i32, i32) {
    %c0_i32 = arith.constant 0 : i32
    %c0_i32_0 = arith.constant 0 : i32
    %c0_i32_1 = arith.constant 0 : i32
    return %arg0, %c0_i32, %c0_i32_0 : i32, i32, i32
  }
}

</mosaic_0001>

<llo_original>
// kernel: tpu_custom_call.1
$region0: #{tpu_custom_call.1}
  #allocation0 [shape = 'u32[]', space=smem, size = 0x4, offset = 0x4, fixed_abs, tag = 'smem constant byte address 0x4 - core index']
  #allocation1 [shape = 'u32[72,128]{1,0:T(1,128)}', space=vmem, size = 0x9000, scoped, tag = 'internal scratch']
  #allocation2 [shape = 'f32[1,1]{1,0:T(1,128)S(1)}', space=vmem, size = 0x200, scoped, tag = 'scoped memory for tpu_custom_call.1']
  %s0 = inlined_call_operand.vmem [shape: f32[2,8,128], index: 0, kind: input, shape index: {}]
  %s1 = inlined_call_operand.vmem [shape: f32[2,8,1], index: 1, kind: input, shape index: {}]
  %s2 = inlined_call_operand.vmem [shape: f32[2,1,128], index: 2, kind: input, shape index: {}]
  %s3 = inlined_call_operand.vmem [shape: bf16[16,24], index: 3, kind: input, shape index: {}]
  %s4 = inlined_call_operand.vmem [shape: f32[16,1], index: 4, kind: input, shape index: {}]
  %s5 = inlined_call_operand.vmem [shape: f32[16,1], index: 5, kind: input, shape index: {}]
  %s6 = inlined_call_operand.vmem [shape: f32[16,1], index: 6, kind: input, shape index: {}]
  %s7 = inlined_call_operand.vmem [shape: bf16[16,48], index: 7, kind: input, shape index: {}]
  %s8 = inlined_call_operand.vmem [shape: f32[16,1], index: 8, kind: input, shape index: {}]
  %s9 = inlined_call_operand.vmem [shape: f32[16,1], index: 9, kind: input, shape index: {}]
  %s10 = inlined_call_operand.vmem [shape: f32[16,1], index: 10, kind: input, shape index: {}]
  %s11 = inlined_call_operand.vmem [shape: f32[16,1], index: 11, kind: input, shape index: {}]
  %s12 = inlined_call_operand.<no memory space> [shape: f32[1,1], index: 12, kind: input, shape index: {}]
  %s13 = inlined_call_operand.hbm [shape: f32[2,1,128], index: 13, kind: output, shape index: {}]
  %s14 = sld [smem:[#allocation0]]
  $region85: #{tpu_custom_call.1} parent=0
    _
  %s16 = ssub.s32 1, %s14
  %s17 = scalar_select 0, %s16, %s14
  %v18 = vstv %s12
  %19 = vst [vmem:[#allocation2] sm:$0x1] %v18
  $region1: #{tpu_custom_call.1} parent=0
    #allocation3 [shape = 'u8[1024]{0}', space=vmem, size = 0x400, scoped, tag = 'output window, operand 0']
    #allocation4 [shape = 's32[2]{0}', space=sflag, size = 0x8, scoped, tag = 'scoped memory for tpu_custom_call.1']
    %20 = vsyncpa [#allocation4], 0
    %s21 = scalar_lea.sflag [#allocation4], 1
    %22 = vsyncpa %s21, 0
    loop: start=0, step=1, limit=4
    $region2: #{tpu_custom_call.1} parent=1 // loop_pre_header
      _
    $region3: #{tpu_custom_call.1} parent=1 // loop_header
      %s24 = sphi 0, %s28
      %p25 = scmp.ge.s32.totalorder %s24, 4
      %s34 = sphi 0, %s36
      %s37 = sphi 0, %s34
      %s38 = sphi 0, %s37
      %s54 = sphi 0, %s38
      %s60 = sphi 0, %s62
      %s63 = sphi 0, %s60
      %s64 = sphi 0, %s63
      %s80 = sphi 0, %s64
      %s86 = sphi 0, %s88
      %s89 = sphi 0, %s86
      %s90 = sphi 0, %s89
      %s106 = sphi 0, %s90
      %s110 = sphi 0, %s110
      %s112 = sphi 0, %s110
      %s113 = sphi 0, %s112
      %s127 = sphi 0, %s113
      %s131 = sphi 0, %s131
      %s133 = sphi 0, %s131
      %s134 = sphi 0, %s133
      %s148 = sphi 0, %s134
      %s152 = sphi 0, %s152
      %s154 = sphi 0, %s152
      %s155 = sphi 0, %s154
      %s169 = sphi 0, %s155
      %s173 = sphi 0, %s173
      %s175 = sphi 0, %s173
      %s176 = sphi 0, %s175
      %s190 = sphi 0, %s176
      %s194 = sphi 0, %s194
      %s196 = sphi 0, %s194
      %s197 = sphi 0, %s196
      %s211 = sphi 0, %s197
      %s215 = sphi 0, %s215
      %s217 = sphi 0, %s215
      %s218 = sphi 0, %s217
      %s232 = sphi 0, %s218
      %s236 = sphi 0, %s236
      %s238 = sphi 0, %s236
      %s239 = sphi 0, %s238
      %s253 = sphi 0, %s239
      %s257 = sphi 0, %s257
      %s259 = sphi 0, %s257
      %s260 = sphi 0, %s259
      %s274 = sphi 0, %s260
      %s278 = sphi 0, %s278
      %s280 = sphi 0, %s278
      %s281 = sphi 0, %s280
      %s295 = sphi 0, %s281
      %s299 = sphi 0, %s299
      %s301 = sphi 0, %s299
      %s302 = sphi 0, %s301
      %s316 = sphi 0, %s302
      %s322 = sphi 0, %s324
      %s325 = sphi 0, %s322
      %s326 = sphi 0, %s325
      %s342 = sphi 0, %s326
    $region4: #{tpu_custom_call.1} parent=1 // loop_header_branch
      %27 = sbr.rel (%p25) target = $region8
    $region5: #{tpu_custom_call.1} parent=1 // loop_body
      %s29 = ssub.s32 %s24, 1
      %s30 = ssub.s32 %s24, 2
      %s31 = sadd.s32 %s24, 1
      %s32 = ssub.s32 %s24, %s31
      %p33 = scmp.eq.s32.totalorder %s32, 0
      %s35 = sadd.s32 %s34, 1
      %s36 = scalar_select %p33, %s34, %s35
      %p39 = pneg %p33
      %p40 = scmp.eq.s32.totalorder %s24, 1
      %p41 = por %p39, %p40
      %p42 = scmp.ne.s32.totalorder %s34, %s37
      %p43 = scmp.eq.s32.totalorder %s24, 0
      %p44 = por %p42, %p43
      %p45 = scmp.ne.s32.totalorder %s34, %s37
      %p46 = scmp.eq.s32.totalorder %s29, 1
      %p47 = por %p45, %p46
      %p48 = scmp.ne.s32.totalorder %s37, %s38
      %p49 = scmp.eq.s32.totalorder %s29, 0
      %p50 = por %p48, %p49
      %p51 = scmp.ne.s32.totalorder %s37, %s38
      %p52 = scmp.eq.s32.totalorder %s30, 1
      %p53 = por %p51, %p52
      %p55 = scmp.ne.s32.totalorder %s38, %s54
      %p56 = scmp.eq.s32.totalorder %s30, 0
      %p57 = por %p55, %p56
      %s58 = ssub.s32 %s24, %s31
      %p59 = scmp.eq.s32.totalorder %s58, 0
      %s61 = sadd.s32 %s60, 1
      %s62 = scalar_select %p59, %s60, %s61
      %p65 = pneg %p59
      %p66 = scmp.eq.s32.totalorder %s24, 1
      %p67 = por %p65, %p66
      %p68 = scmp.ne.s32.totalorder %s60, %s63
      %p69 = scmp.eq.s32.totalorder %s24, 0
      %p70 = por %p68, %p69
      %p71 = scmp.ne.s32.totalorder %s60, %s63
      %p72 = scmp.eq.s32.totalorder %s29, 1
      %p73 = por %p71, %p72
      %p74 = scmp.ne.s32.totalorder %s63, %s64
      %p75 = scmp.eq.s32.totalorder %s29, 0
      %p76 = por %p74, %p75
      %p77 = scmp.ne.s32.totalorder %s63, %s64
      %p78 = scmp.eq.s32.totalorder %s30, 1
      %p79 = por %p77, %p78
      %p81 = scmp.ne.s32.totalorder %s64, %s80
      %p82 = scmp.eq.s32.totalorder %s30, 0
      %p83 = por %p81, %p82
      %s84 = ssub.s32 %s24, %s31
      %p85 = scmp.eq.s32.totalorder %s84, 0
      %s87 = sadd.s32 %s86, 1
      %s88 = scalar_select %p85, %s86, %s87
      %p91 = pneg %p85
      %p92 = scmp.eq.s32.totalorder %s24, 1
      %p93 = por %p91, %p92
      %p94 = scmp.ne.s32.totalorder %s86, %s89
      %p95 = scmp.eq.s32.totalorder %s24, 0
      %p96 = por %p94, %p95
      %p97 = scmp.ne.s32.totalorder %s86, %s89
      %p98 = scmp.eq.s32.totalorder %s29, 1
      %p99 = por %p97, %p98
      %p100 = scmp.ne.s32.totalorder %s89, %s90
      %p101 = scmp.eq.s32.totalorder %s29, 0
      %p102 = por %p100, %p101
      %p103 = scmp.ne.s32.totalorder %s89, %s90
      %p104 = scmp.eq.s32.totalorder %s30, 1
      %p105 = por %p103, %p104
      %p107 = scmp.ne.s32.totalorder %s90, %s106
      %p108 = scmp.eq.s32.totalorder %s30, 0
      %p109 = por %p107, %p108
      %s111 = sadd.s32 %s110, 1
      %p114 = scmp.eq.s32.totalorder %s24, 1
      %p115 = scmp.ne.s32.totalorder %s110, %s112
      %p116 = scmp.eq.s32.totalorder %s24, 0
      %p117 = por %p115, %p116
      %p118 = scmp.ne.s32.totalorder %s110, %s112
      %p119 = scmp.eq.s32.totalorder %s29, 1
      %p120 = por %p118, %p119
      %p121 = scmp.ne.s32.totalorder %s112, %s113
      %p122 = scmp.eq.s32.totalorder %s29, 0
      %p123 = por %p121, %p122
      %p124 = scmp.ne.s32.totalorder %s112, %s113
      %p125 = scmp.eq.s32.totalorder %s30, 1
      %p126 = por %p124, %p125
      %p128 = scmp.ne.s32.totalorder %s113, %s127
      %p129 = scmp.eq.s32.totalorder %s30, 0
      %p130 = por %p128, %p129
      %s132 = sadd.s32 %s131, 1
      %p135 = scmp.eq.s32.totalorder %s24, 1
      %p136 = scmp.ne.s32.totalorder %s131, %s133
      %p137 = scmp.eq.s32.totalorder %s24, 0
      %p138 = por %p136, %p137
      %p139 = scmp.ne.s32.totalorder %s131, %s133
      %p140 = scmp.eq.s32.totalorder %s29, 1
      %p141 = por %p139, %p140
      %p142 = scmp.ne.s32.totalorder %s133, %s134
      %p143 = scmp.eq.s32.totalorder %s29, 0
      %p144 = por %p142, %p143
      %p145 = scmp.ne.s32.totalorder %s133, %s134
      %p146 = scmp.eq.s32.totalorder %s30, 1
      %p147 = por %p145, %p146
      %p149 = scmp.ne.s32.totalorder %s134, %s148
      %p150 = scmp.eq.s32.totalorder %s30, 0
      %p151 = por %p149, %p150
      %s153 = sadd.s32 %s152, 1
      %p156 = scmp.eq.s32.totalorder %s24, 1
      %p157 = scmp.ne.s32.totalorder %s152, %s154
      %p158 = scmp.eq.s32.totalorder %s24, 0
      %p159 = por %p157, %p158
      %p160 = scmp.ne.s32.totalorder %s152, %s154
      %p161 = scmp.eq.s32.totalorder %s29, 1
      %p162 = por %p160, %p161
      %p163 = scmp.ne.s32.totalorder %s154, %s155
      %p164 = scmp.eq.s32.totalorder %s29, 0
      %p165 = por %p163, %p164
      %p166 = scmp.ne.s32.totalorder %s154, %s155
      %p167 = scmp.eq.s32.totalorder %s30, 1
      %p168 = por %p166, %p167
      %p170 = scmp.ne.s32.totalorder %s155, %s169
      %p171 = scmp.eq.s32.totalorder %s30, 0
      %p172 = por %p170, %p171
      %s174 = sadd.s32 %s173, 1
      %p177 = scmp.eq.s32.totalorder %s24, 1
      %p178 = scmp.ne.s32.totalorder %s173, %s175
      %p179 = scmp.eq.s32.totalorder %s24, 0
      %p180 = por %p178, %p179
      %p181 = scmp.ne.s32.totalorder %s173, %s175
      %p182 = scmp.eq.s32.totalorder %s29, 1
      %p183 = por %p181, %p182
      %p184 = scmp.ne.s32.totalorder %s175, %s176
      %p185 = scmp.eq.s32.totalorder %s29, 0
      %p186 = por %p184, %p185
      %p187 = scmp.ne.s32.totalorder %s175, %s176
      %p188 = scmp.eq.s32.totalorder %s30, 1
      %p189 = por %p187, %p188
      %p191 = scmp.ne.s32.totalorder %s176, %s190
      %p192 = scmp.eq.s32.totalorder %s30, 0
      %p193 = por %p191, %p192
      %s195 = sadd.s32 %s194, 1
      %p198 = scmp.eq.s32.totalorder %s24, 1
      %p199 = scmp.ne.s32.totalorder %s194, %s196
      %p200 = scmp.eq.s32.totalorder %s24, 0
      %p201 = por %p199, %p200
      %p202 = scmp.ne.s32.totalorder %s194, %s196
      %p203 = scmp.eq.s32.totalorder %s29, 1
      %p204 = por %p202, %p203
      %p205 = scmp.ne.s32.totalorder %s196, %s197
      %p206 = scmp.eq.s32.totalorder %s29, 0
      %p207 = por %p205, %p206
      %p208 = scmp.ne.s32.totalorder %s196, %s197
      %p209 = scmp.eq.s32.totalorder %s30, 1
      %p210 = por %p208, %p209
      %p212 = scmp.ne.s32.totalorder %s197, %s211
      %p213 = scmp.eq.s32.totalorder %s30, 0
      %p214 = por %p212, %p213
      %s216 = sadd.s32 %s215, 1
      %p219 = scmp.eq.s32.totalorder %s24, 1
      %p220 = scmp.ne.s32.totalorder %s215, %s217
      %p221 = scmp.eq.s32.totalorder %s24, 0
      %p222 = por %p220, %p221
      %p223 = scmp.ne.s32.totalorder %s215, %s217
      %p224 = scmp.eq.s32.totalorder %s29, 1
      %p225 = por %p223, %p224
      %p226 = scmp.ne.s32.totalorder %s217, %s218
      %p227 = scmp.eq.s32.totalorder %s29, 0
      %p228 = por %p226, %p227
      %p229 = scmp.ne.s32.totalorder %s217, %s218
      %p230 = scmp.eq.s32.totalorder %s30, 1
      %p231 = por %p229, %p230
      %p233 = scmp.ne.s32.totalorder %s218, %s232
      %p234 = scmp.eq.s32.totalorder %s30, 0
      %p235 = por %p233, %p234
      %s237 = sadd.s32 %s236, 1
      %p240 = scmp.eq.s32.totalorder %s24, 1
      %p241 = scmp.ne.s32.totalorder %s236, %s238
      %p242 = scmp.eq.s32.totalorder %s24, 0
      %p243 = por %p241, %p242
      %p244 = scmp.ne.s32.totalorder %s236, %s238
      %p245 = scmp.eq.s32.totalorder %s29, 1
      %p246 = por %p244, %p245
      %p247 = scmp.ne.s32.totalorder %s238, %s239
      %p248 = scmp.eq.s32.totalorder %s29, 0
      %p249 = por %p247, %p248
      %p250 = scmp.ne.s32.totalorder %s238, %s239
      %p251 = scmp.eq.s32.totalorder %s30, 1
      %p252 = por %p250, %p251
      %p254 = scmp.ne.s32.totalorder %s239, %s253
      %p255 = scmp.eq.s32.totalorder %s30, 0
      %p256 = por %p254, %p255
      %s258 = sadd.s32 %s257, 1
      %p261 = scmp.eq.s32.totalorder %s24, 1
      %p262 = scmp.ne.s32.totalorder %s257, %s259
      %p263 = scmp.eq.s32.totalorder %s24, 0
      %p264 = por %p262, %p263
      %p265 = scmp.ne.s32.totalorder %s257, %s259
      %p266 = scmp.eq.s32.totalorder %s29, 1
      %p267 = por %p265, %p266
      %p268 = scmp.ne.s32.totalorder %s259, %s260
      %p269 = scmp.eq.s32.totalorder %s29, 0
      %p270 = por %p268, %p269
      %p271 = scmp.ne.s32.totalorder %s259, %s260
      %p272 = scmp.eq.s32.totalorder %s30, 1
      %p273 = por %p271, %p272
      %p275 = scmp.ne.s32.totalorder %s260, %s274
      %p276 = scmp.eq.s32.totalorder %s30, 0
      %p277 = por %p275, %p276
      %s279 = sadd.s32 %s278, 1
      %p282 = scmp.eq.s32.totalorder %s24, 1
      %p283 = scmp.ne.s32.totalorder %s278, %s280
      %p284 = scmp.eq.s32.totalorder %s24, 0
      %p285 = por %p283, %p284
      %p286 = scmp.ne.s32.totalorder %s278, %s280
      %p287 = scmp.eq.s32.totalorder %s29, 1
      %p288 = por %p286, %p287
      %p289 = scmp.ne.s32.totalorder %s280, %s281
      %p290 = scmp.eq.s32.totalorder %s29, 0
      %p291 = por %p289, %p290
      %p292 = scmp.ne.s32.totalorder %s280, %s281
      %p293 = scmp.eq.s32.totalorder %s30, 1
      %p294 = por %p292, %p293
      %p296 = scmp.ne.s32.totalorder %s281, %s295
      %p297 = scmp.eq.s32.totalorder %s30, 0
      %p298 = por %p296, %p297
      %s300 = sadd.s32 %s299, 1
      %p303 = scmp.eq.s32.totalorder %s24, 1
      %p304 = scmp.ne.s32.totalorder %s299, %s301
      %p305 = scmp.eq.s32.totalorder %s24, 0
      %p306 = por %p304, %p305
      %p307 = scmp.ne.s32.totalorder %s299, %s301
      %p308 = scmp.eq.s32.totalorder %s29, 1
      %p309 = por %p307, %p308
      %p310 = scmp.ne.s32.totalorder %s301, %s302
      %p311 = scmp.eq.s32.totalorder %s29, 0
      %p312 = por %p310, %p311
      %p313 = scmp.ne.s32.totalorder %s301, %s302
      %p314 = scmp.eq.s32.totalorder %s30, 1
      %p315 = por %p313, %p314
      %p317 = scmp.ne.s32.totalorder %s302, %s316
      %p318 = scmp.eq.s32.totalorder %s30, 0
      %p319 = por %p317, %p318
      %s320 = ssub.s32 %s24, %s31
      %p321 = scmp.eq.s32.totalorder %s320, 0
      %s323 = sadd.s32 %s322, 1
      %s324 = scalar_select %p321, %s322, %s323
      %p327 = pneg %p321
      %p328 = scmp.eq.s32.totalorder %s24, 1
      %p329 = por %p327, %p328
      %p330 = scmp.ne.s32.totalorder %s322, %s325
      %p331 = scmp.eq.s32.totalorder %s24, 0
      %p332 = por %p330, %p331
      %p333 = scmp.ne.s32.totalorder %s322, %s325
      %p334 = scmp.eq.s32.totalorder %s29, 1
      %p335 = por %p333, %p334
      %p336 = scmp.ne.s32.totalorder %s325, %s326
      %p337 = scmp.eq.s32.totalorder %s29, 0
      %p338 = por %p336, %p337
      %p339 = scmp.ne.s32.totalorder %s325, %s326
      %p340 = scmp.eq.s32.totalorder %s30, 1
      %p341 = por %p339, %p340
      %p343 = scmp.ne.s32.totalorder %s326, %s342
      %p344 = scmp.eq.s32.totalorder %s30, 0
      %p345 = por %p343, %p344
      %p346 = scmp.le.s32.totalorder 1, %s24
      %p347 = scmp.lt.s32.totalorder %s24, 3
      %p348 = pnand %p346, %p347
      %p349 = pneg %p348
      // Predicated region
      $region9: #{tpu_custom_call.1} parent=5 // pred_check
        _
      $region10: #{tpu_custom_call.1} parent=5 // pred_check_branch
        %351 = sbr.rel (%p348) target = $region12
      $region11: #{tpu_custom_call.1} parent=5 // pred_region
        %s352 = ssub.s32 %s24, 1
        // Predicated region
        $region13: #{tpu_custom_call.1} parent=11 // pred_check
          %p353 = pneg %p123
        $region14: #{tpu_custom_call.1} parent=11 // pred_check_branch
          %355 = sbr.rel (%p353) target = $region16
        $region15: #{tpu_custom_call.1} parent=11 // pred_region
          _
        $region16: #{tpu_custom_call.1} parent=11 // pred_fallthru
          _
        // Predicated region
        $region17: #{tpu_custom_call.1} parent=11 // pred_check
          %p356 = pneg %p144
        $region18: #{tpu_custom_call.1} parent=11 // pred_check_branch
          %358 = sbr.rel (%p356) target = $region20
        $region19: #{tpu_custom_call.1} parent=11 // pred_region
          _
        $region20: #{tpu_custom_call.1} parent=11 // pred_fallthru
          _
        // Predicated region
        $region21: #{tpu_custom_call.1} parent=11 // pred_check
          %p359 = pneg %p165
        $region22: #{tpu_custom_call.1} parent=11 // pred_check_branch
          %361 = sbr.rel (%p359) target = $region24
        $region23: #{tpu_custom_call.1} parent=11 // pred_region
          _
        $region24: #{tpu_custom_call.1} parent=11 // pred_fallthru
          _
        // Predicated region
        $region25: #{tpu_custom_call.1} parent=11 // pred_check
          %p362 = pneg %p186
        $region26: #{tpu_custom_call.1} parent=11 // pred_check_branch
          %364 = sbr.rel (%p362) target = $region28
        $region27: #{tpu_custom_call.1} parent=11 // pred_region
          _
        $region28: #{tpu_custom_call.1} parent=11 // pred_fallthru
          _
        // Predicated region
        $region29: #{tpu_custom_call.1} parent=11 // pred_check
          %p365 = pneg %p207
        $region30: #{tpu_custom_call.1} parent=11 // pred_check_branch
          %367 = sbr.rel (%p365) target = $region32
        $region31: #{tpu_custom_call.1} parent=11 // pred_region
          _
        $region32: #{tpu_custom_call.1} parent=11 // pred_fallthru
          _
        // Predicated region
        $region33: #{tpu_custom_call.1} parent=11 // pred_check
          %p368 = pneg %p228
        $region34: #{tpu_custom_call.1} parent=11 // pred_check_branch
          %370 = sbr.rel (%p368) target = $region36
        $region35: #{tpu_custom_call.1} parent=11 // pred_region
          _
        $region36: #{tpu_custom_call.1} parent=11 // pred_fallthru
          _
        // Predicated region
        $region37: #{tpu_custom_call.1} parent=11 // pred_check
          %p371 = pneg %p249
        $region38: #{tpu_custom_call.1} parent=11 // pred_check_branch
          %373 = sbr.rel (%p371) target = $region40
        $region39: #{tpu_custom_call.1} parent=11 // pred_region
          _
        $region40: #{tpu_custom_call.1} parent=11 // pred_fallthru
          _
        // Predicated region
        $region41: #{tpu_custom_call.1} parent=11 // pred_check
          %p374 = pneg %p270
        $region42: #{tpu_custom_call.1} parent=11 // pred_check_branch
          %376 = sbr.rel (%p374) target = $region44
        $region43: #{tpu_custom_call.1} parent=11 // pred_region
          _
        $region44: #{tpu_custom_call.1} parent=11 // pred_fallthru
          _
        // Predicated region
        $region45: #{tpu_custom_call.1} parent=11 // pred_check
          %p377 = pneg %p291
        $region46: #{tpu_custom_call.1} parent=11 // pred_check_branch
          %379 = sbr.rel (%p377) target = $region48
        $region47: #{tpu_custom_call.1} parent=11 // pred_region
          _
        $region48: #{tpu_custom_call.1} parent=11 // pred_fallthru
          _
        // Predicated region
        $region49: #{tpu_custom_call.1} parent=11 // pred_check
          %p380 = pneg %p312
        $region50: #{tpu_custom_call.1} parent=11 // pred_check_branch
          %382 = sbr.rel (%p380) target = $region52
        $region51: #{tpu_custom_call.1} parent=11 // pred_region
          _
        $region52: #{tpu_custom_call.1} parent=11 // pred_fallthru
          _
      $region12: #{tpu_custom_call.1} parent=5 // pred_fallthru
        _
      %p383 = scmp.lt.s32.totalorder %s24, 2
      // Predicated region
      $region53: #{tpu_custom_call.1} parent=5 // pred_check
        %p384 = pneg %p383
      $region54: #{tpu_custom_call.1} parent=5 // pred_check_branch
        %386 = sbr.rel (%p384) target = $region56
      $region55: #{tpu_custom_call.1} parent=5 // pred_region
        // Predicated region
        $region57: #{tpu_custom_call.1} parent=55 // pred_check
          %p387 = pneg %p44
        $region58: #{tpu_custom_call.1} parent=55 // pred_check_branch
          %389 = sbr.rel (%p387) target = $region60
        $region59: #{tpu_custom_call.1} parent=55 // pred_region
          %p390 = scmp.lt.s32.totalorder %s24, 1
          %s391 = scalar_select %p390, %s24, 1
          %s392 = smul.addr %s391, 8
          %s393 = scalar_lea.vmem %s0, %s392
        $region60: #{tpu_custom_call.1} parent=55 // pred_fallthru
          _
        // Predicated region
        $region61: #{tpu_custom_call.1} parent=55 // pred_check
          %p394 = pneg %p70
        $region62: #{tpu_custom_call.1} parent=55 // pred_check_branch
          %396 = sbr.rel (%p394) target = $region64
        $region63: #{tpu_custom_call.1} parent=55 // pred_region
          %p397 = scmp.lt.s32.totalorder %s24, 1
          %s398 = scalar_select %p397, %s24, 1
          %s399 = smul.addr %s398, 8
          %s400 = scalar_lea.vmem %s1, %s399
        $region64: #{tpu_custom_call.1} parent=55 // pred_fallthru
          _
        // Predicated region
        $region65: #{tpu_custom_call.1} parent=55 // pred_check
          %p401 = pneg %p96
        $region66: #{tpu_custom_call.1} parent=55 // pred_check_branch
          %403 = sbr.rel (%p401) target = $region68
        $region67: #{tpu_custom_call.1} parent=55 // pred_region
          %p404 = scmp.lt.s32.totalorder %s24, 1
          %s405 = scalar_select %p404, %s24, 1
          %s406 = scalar_lea.vmem %s2, %s405
        $region68: #{tpu_custom_call.1} parent=55 // pred_fallthru
          _
      $region56: #{tpu_custom_call.1} parent=5 // pred_fallthru
        _
      %p407 = scmp.le.s32.totalorder 1, %s24
      %p408 = scmp.lt.s32.totalorder %s24, 3
      %p409 = pnand %p407, %p408
      %p410 = pneg %p409
      // Predicated region
      $region69: #{tpu_custom_call.1} parent=5 // pred_check
        _
      $region70: #{tpu_custom_call.1} parent=5 // pred_check_branch
        %412 = sbr.rel (%p409) target = $region72
      $region71: #{tpu_custom_call.1} parent=5 // pred_region
        %s413 = ssub.s32 %s24, 1
        %p414 = scmp.lt.s32.totalorder %s29, 1
        %s415 = scalar_select %p414, %s29, 1
        %s416 = smul.addr %s415, 8
        %s417 = scalar_lea.vmem %s0, %s416
        %p418 = pneg %p50
        %p419 = pneg %p47
        %p420 = scmp.lt.s32.totalorder %s29, 1
        %s421 = scalar_select %p420, %s29, 1
        %s422 = smul.addr %s421, 8
        %s423 = scalar_lea.vmem %s1, %s422
        %p424 = pneg %p76
        %p425 = pneg %p73
        %p426 = scmp.lt.s32.totalorder %s29, 1
        %s427 = scalar_select %p426, %s29, 1
        %s428 = scalar_lea.vmem %s2, %s427
        %p429 = pneg %p102
        %p430 = pneg %p99
        %p431 = pneg %p123
        %p432 = pneg %p120
        %p433 = pneg %p144
        %p434 = pneg %p141
        %p435 = pneg %p165
        %p436 = pneg %p162
        %p437 = pneg %p186
        %p438 = pneg %p183
        %p439 = pneg %p207
        %p440 = pneg %p204
        %p441 = pneg %p228
        %p442 = pneg %p225
        %p443 = pneg %p249
        %p444 = pneg %p246
        %p445 = pneg %p270
        %p446 = pneg %p267
        %p447 = pneg %p291
        %p448 = pneg %p288
        %p449 = pneg %p312
        %p450 = pneg %p309
        %p451 = pneg %p338
        %p452 = pneg %p335
        %s453 = sand.u32 %s325, 1
        %s454 = scalar_lea.sflag [#allocation4], %s453
        %s455 = sand.u32 %s325, 1
        %s456 = scalar_lea.vmem [#allocation3], %s455
        %p457 = scmp.lt.s32.totalorder %s29, 1
        %s458 = scalar_select %p457, %s29, 1
        %s459 = smul.addr %s458, 8
        %s460 = scalar_lea.vmem %s0, %s459
        %p461 = scmp.lt.s32.totalorder %s29, 1
        %s462 = scalar_select %p461, %s29, 1
        %s463 = smul.addr %s462, 8
        %s464 = scalar_lea.vmem %s1, %s463
        %p465 = scmp.lt.s32.totalorder %s29, 1
        %s466 = scalar_select %p465, %s29, 1
        %s467 = scalar_lea.vmem %s2, %s466
        %v469 = vld [vmem:[%s460] sm:$0xff]
        %v470 = vld [vmem:[%s464] sm:$0xff]
        %v471 = vld [vmem:[%s467] sm:$0x1]
        %v473 = vperm.slane %v471, 0
        %476 = vset.pattern.permute.xlu0 0
        %477 = vperm.xlu0 %476, %v470
        %v478 = vpop.permute.xlu0 %477
        %v480 = vadd.f32 %v469, %v478
        %v481 = vmul.f32 %v480, %v473
        %482 = vrot.lane.b32.xlu0 %v481, 1
        %v483 = vpop.permute.xlu0 %482
        %484 = vrot.lane.b32.xlu0 %v481, 127
        %v485 = vpop.permute.xlu0 %484
        %v486 = vpack.c.bf16 %v481, %v483
        %v487 = vpack.c.bf16 %v485, %v485
        %v488 = vld [vmem:[%s3] sm:$0xf]
        %v489 = vld [vmem:[%s3 + $0x4] sm:$0xf]
        %v490 = vld [vmem:[%s4] sm:$0xff]
        %v491 = vld [vmem:[%s4 + $0x8] sm:$0xff]
        %493 = vset.pattern.permute.xlu0 0
        %494 = vperm.xlu0 %493, %v490
        %v495 = vpop.permute.xlu0 %494
        %498 = vset.pattern.permute.xlu0 0
        %499 = vperm.xlu0 %498, %v491
        %v500 = vpop.permute.xlu0 %499
        %v504 = vunpack.c.l.b16 %v488
        %v505 = vunpack.c.l.b16 %v489
        %v506 = vpack.c.b16 %v505, %v504
        %vm507 = vcmask 195584
        %v509 = vsel %vm507, %v506, 0
        %vm511 = vcmask 1043456
        %v513 = vsel %vm511, %v487, 0
        %515 = vmatpush.bf16.msra.mxu0 0
        %516 = vmatpush.bf16.msra.mxu0 0
        %517 = vmatpush.bf16.msra.mxu0 0
        %518 = vmatpush.bf16.msra.mxu0 0
        %519 = vmatpush.bf16.msra.mxu0 0
        %520 = vmatpush.bf16.msra.mxu0 0
        %521 = vmatpush.bf16.msra.mxu0 %v513
        %522 = vmatpush.bf16.msra.mxu0 %v486
        %523 = vmatmul.bf16.gmra.mxu0 %v509
        %v524 = vpop.f32.mrf.mxu0
        %v525 = vadd.f32 %v495, %v524
        %v526 = vpop.f32.mrf.mxu0
        %v527 = vadd.f32 %v500, %v526
        %528 = vdwg.mxu0
        %v529 = vmax.f32 %v525, 0.0
        %v530 = vmax.f32 %v527, 0.0
        %v531 = vld [vmem:[%s5] sm:$0xff]
        %v532 = vld [vmem:[%s5 + $0x8] sm:$0xff]
        %v533 = vld [vmem:[%s6] sm:$0xff]
        %v534 = vld [vmem:[%s6 + $0x8] sm:$0xff]
        %v535 = vadd.f32 %v529, %v530
        %v536 = vrot.slane %v535, 4
        %v537 = vadd.f32 %v535, %v536
        %v538 = vrot.slane %v537, 2
        %v539 = vadd.f32 %v537, %v538
        %v540 = vrot.slane %v539, 1
        %v541 = vadd.f32 %v539, %v540
        %v542 = vmul.f32 %v541, 0.0625
        %v543 = vmul.f32 %v529, %v529
        %v544 = vmul.f32 %v530, %v530
        %v545 = vadd.f32 %v543, %v544
        %v546 = vrot.slane %v545, 4
        %v547 = vadd.f32 %v545, %v546
        %v548 = vrot.slane %v547, 2
        %v549 = vadd.f32 %v547, %v548
        %v550 = vrot.slane %v549, 1
        %v551 = vadd.f32 %v549, %v550
        %v552 = vmul.f32 %v551, 0.0625
        %v553 = vmul.f32 %v542, %v542
        %v554 = vsub.f32 %v552, %v553
        %v555 = vmax.f32 %v554, 0.0
        %v556 = vsub.f32 %v529, %v542
        %v557 = vsub.f32 %v530, %v542
        %v558 = vadd.f32 %v555, 1e-05
        %v559 = vrsqrt.pop %v558
        %v560 = vmul.f32 %v559, %v558
        %v561 = vmul.f32 %v560, %v559
        %v562 = vmul.f32 0.5, %v561
        %v563 = vsub.f32 1.5, %v562
        %v564 = vmul.f32 %v559, %v563
        %vm565 = vweird.f32 %v558
        %vm566 = vweird.f32 %v559
        %vm567 = vmor %vm565, %vm566
        %v568 = vsel %vm567, %v559, %v564
        %v569 = vmul.f32 %v556, %v568
        %v570 = vmul.f32 %v557, %v568
        %572 = vset.pattern.permute.xlu0 0
        %573 = vperm.xlu0 %572, %v531
        %v574 = vpop.permute.xlu0 %573
        %577 = vset.pattern.permute.xlu0 0
        %578 = vperm.xlu0 %577, %v532
        %v579 = vpop.permute.xlu0 %578
        %v581 = vmul.f32 %v569, %v574
        %v582 = vmul.f32 %v570, %v579
        %584 = vset.pattern.permute.xlu0 0
        %585 = vperm.xlu0 %584, %v533
        %v586 = vpop.permute.xlu0 %585
        %589 = vset.pattern.permute.xlu0 0
        %590 = vperm.xlu0 %589, %v534
        %v591 = vpop.permute.xlu0 %590
        %v593 = vadd.f32 %v581, %v586
        %v594 = vadd.f32 %v582, %v591
        %v595 = vmul.f32 %v593, %v473
        %v596 = vmul.f32 %v594, %v473
        %597 = vrot.lane.b32.xlu0 %v595, 1
        %v598 = vpop.permute.xlu0 %597
        %599 = vrot.lane.b32.xlu0 %v596, 1
        %v600 = vpop.permute.xlu0 %599
        %601 = vrot.lane.b32.xlu0 %v595, 127
        %v602 = vpop.permute.xlu0 %601
        %603 = vrot.lane.b32.xlu0 %v596, 127
        %v604 = vpop.permute.xlu0 %603
        %v605 = vpack.c.bf16 %v600, %v598
        %v606 = vpack.c.bf16 %v596, %v595
        %v607 = vpack.c.bf16 %v604, %v602
        %v608 = vld [vmem:[%s7] sm:$0xf]
        %v609 = vld [vmem:[%s7 + $0x4] sm:$0xf]
        %v610 = vld [vmem:[%s8] sm:$0xff]
        %v611 = vld [vmem:[%s8 + $0x8] sm:$0xff]
        %613 = vset.pattern.permute.xlu0 0
        %614 = vperm.xlu0 %613, %v610
        %v615 = vpop.permute.xlu0 %614
        %618 = vset.pattern.permute.xlu0 0
        %619 = vperm.xlu0 %618, %v611
        %v620 = vpop.permute.xlu0 %619
        %v624 = vunpack.c.l.b16 %v608
        %v625 = vunpack.c.l.b16 %v609
        %v626 = vpack.c.b16 %v625, %v624
        %vm627 = vcmask 392192
        %v629 = vsel %vm627, %v626, 0
        %631 = vmatpush.bf16.msra.mxu0 0
        %632 = vmatpush.bf16.msra.mxu0 0
        %633 = vmatpush.bf16.msra.mxu0 0
        %634 = vmatpush.bf16.msra.mxu0 0
        %635 = vmatpush.bf16.msra.mxu0 0
        %636 = vmatpush.bf16.msra.mxu0 %v607
        %637 = vmatpush.bf16.msra.mxu0 %v606
        %638 = vmatpush.bf16.msra.mxu0 %v605
        %639 = vmatmul.bf16.gmra.mxu0 %v629
        %v640 = vpop.f32.mrf.mxu0
        %v641 = vadd.f32 %v615, %v640
        %v642 = vpop.f32.mrf.mxu0
        %v643 = vadd.f32 %v620, %v642
        %644 = vdwg.mxu0
        %v645 = vmax.f32 %v641, 0.0
        %v646 = vmax.f32 %v643, 0.0
        %v647 = vld [vmem:[%s9] sm:$0xff]
        %v648 = vld [vmem:[%s9 + $0x8] sm:$0xff]
        %v649 = vld [vmem:[%s10] sm:$0xff]
        %v650 = vld [vmem:[%s10 + $0x8] sm:$0xff]
        %v651 = vadd.f32 %v645, %v646
        %v652 = vrot.slane %v651, 4
        %v653 = vadd.f32 %v651, %v652
        %v654 = vrot.slane %v653, 2
        %v655 = vadd.f32 %v653, %v654
        %v656 = vrot.slane %v655, 1
        %v657 = vadd.f32 %v655, %v656
        %v658 = vmul.f32 %v657, 0.0625
        %v659 = vmul.f32 %v645, %v645
        %v660 = vmul.f32 %v646, %v646
        %v661 = vadd.f32 %v659, %v660
        %v662 = vrot.slane %v661, 4
        %v663 = vadd.f32 %v661, %v662
        %v664 = vrot.slane %v663, 2
        %v665 = vadd.f32 %v663, %v664
        %v666 = vrot.slane %v665, 1
        %v667 = vadd.f32 %v665, %v666
        %v668 = vmul.f32 %v667, 0.0625
        %v669 = vmul.f32 %v658, %v658
        %v670 = vsub.f32 %v668, %v669
        %v671 = vmax.f32 %v670, 0.0
        %v672 = vsub.f32 %v645, %v658
        %v673 = vsub.f32 %v646, %v658
        %v674 = vadd.f32 %v671, 1e-05
        %v675 = vrsqrt.pop %v674
        %v676 = vmul.f32 %v675, %v674
        %v677 = vmul.f32 %v676, %v675
        %v678 = vmul.f32 0.5, %v677
        %v679 = vsub.f32 1.5, %v678
        %v680 = vmul.f32 %v675, %v679
        %vm681 = vweird.f32 %v674
        %vm682 = vweird.f32 %v675
        %vm683 = vmor %vm681, %vm682
        %v684 = vsel %vm683, %v675, %v680
        %v685 = vmul.f32 %v672, %v684
        %v686 = vmul.f32 %v673, %v684
        %688 = vset.pattern.permute.xlu0 0
        %689 = vperm.xlu0 %688, %v647
        %v690 = vpop.permute.xlu0 %689
        %693 = vset.pattern.permute.xlu0 0
        %694 = vperm.xlu0 %693, %v648
        %v695 = vpop.permute.xlu0 %694
        %v697 = vmul.f32 %v685, %v690
        %v698 = vmul.f32 %v686, %v695
        %700 = vset.pattern.permute.xlu0 0
        %701 = vperm.xlu0 %700, %v649
        %v702 = vpop.permute.xlu0 %701
        %705 = vset.pattern.permute.xlu0 0
        %706 = vperm.xlu0 %705, %v650
        %v707 = vpop.permute.xlu0 %706
        %v709 = vadd.f32 %v697, %v702
        %v710 = vadd.f32 %v698, %v707
        %v711 = vmul.f32 %v709, %v473
        %v712 = vmul.f32 %v710, %v473
        %v713 = vld [vmem:[%s11] sm:$0xff]
        %v714 = vld [vmem:[%s11 + $0x8] sm:$0xff]
        %716 = vset.pattern.permute.xlu0 0
        %717 = vperm.xlu0 %716, %v713
        %v718 = vpop.permute.xlu0 %717
        %721 = vset.pattern.permute.xlu0 0
        %722 = vperm.xlu0 %721, %v714
        %v723 = vpop.permute.xlu0 %722
        %v725 = vmul.f32 %v711, %v718
        %v726 = vmul.f32 %v712, %v723
        %v727 = vadd.f32 %v725, %v726
        %v728 = vrot.slane %v727, 4
        %v729 = vadd.f32 %v727, %v728
        %v730 = vrot.slane %v729, 2
        %v731 = vadd.f32 %v729, %v730
        %v732 = vrot.slane %v731, 1
        %v733 = vadd.f32 %v731, %v732
        %v734 = vld [vmem:[#allocation2] sm:$0x1]
        %736 = vset.pattern.permute.xlu0 0
        %737 = vperm.xlu0 %736, %v734
        %v738 = vpop.permute.xlu0 %737
        %v740 = vperm.slane %v738, 0
        %v741 = vadd.f32 %v733, %v740
        %v742 = vmul.f32 %v741, %v471
        %743 = vst [vmem:[%s456] sm:$0x1] %v742
        %s744 = sand.u32 %s325, 1
        %s745 = scalar_lea.sflag [#allocation4], %s744
        %s746 = sand.u32 %s325, 1
        %s747 = scalar_lea.vmem [#allocation3], %s746
        // Predicated region
        $region73: #{tpu_custom_call.1} parent=71 // pred_check
          %p748 = pneg %p335
        $region74: #{tpu_custom_call.1} parent=71 // pred_check_branch
          %750 = sbr.rel (%p748) target = $region76
        $region75: #{tpu_custom_call.1} parent=71 // pred_region
          %752 = vsyncadd %s745, 0
          %s753 = scalar_lea.hbm %s13, %s29
          %s755 = sshll.u32 %s747, 4
          %s756 = int_to_ptr.vmem [resolvable:$true] %s755
          %s757 = sshll.u32 %s753, 4
          %s758 = int_to_ptr.hbm [resolvable:$true] %s757
          %760 = dma.vmem_to_hbm [thread:$0]  %s756, 16, %s758, %s745
        $region76: #{tpu_custom_call.1} parent=71 // pred_fallthru
          _
      $region72: #{tpu_custom_call.1} parent=5 // pred_fallthru
        _
      %p761 = scmp.le.s32.totalorder 2, %s24
      // Predicated region
      $region77: #{tpu_custom_call.1} parent=5 // pred_check
        %p762 = pneg %p761
      $region78: #{tpu_custom_call.1} parent=5 // pred_check_branch
        %764 = sbr.rel (%p762) target = $region80
      $region79: #{tpu_custom_call.1} parent=5 // pred_region
        %s765 = ssub.s32 %s24, 2
        // Predicated region
        $region81: #{tpu_custom_call.1} parent=79 // pred_check
          %p766 = pneg %p341
        $region82: #{tpu_custom_call.1} parent=79 // pred_check_branch
          %768 = sbr.rel (%p766) target = $region84
        $region83: #{tpu_custom_call.1} parent=79 // pred_region
          %s769 = sand.u32 %s326, 1
          %s770 = scalar_lea.sflag [#allocation4], %s769
          %s771 = sand.u32 %s326, 1
          %s772 = scalar_lea.vmem [#allocation3], %s771
          %774 = dma.done %s770, 16
        $region84: #{tpu_custom_call.1} parent=79 // pred_fallthru
          _
      $region80: #{tpu_custom_call.1} parent=5 // pred_fallthru
        _
    $region6: #{tpu_custom_call.1} parent=1 // loop_footer
      %s28 = sadd.s32 1, %s24
    $region7: #{tpu_custom_call.1} parent=1 // loop_footer_branch
      %23 = sbr.rel target = $region3
    $region8: #{tpu_custom_call.1} parent=1 // loop_exit
      _
    %775 = vsyncpa [#allocation4], 1
    %s776 = scalar_lea.sflag [#allocation4], 1
    %777 = vsyncpa %s776, 1

</llo_original>
